<compile_context>
chip_gen: v6e
topology: v6e:2x2x1
jax: 0.10.0
libtpu: 0.0.40
codegen_flags: <defaults>
</compile_context>

<pallas_src>
import functools
import math

import jax
import jax.numpy as jnp
from jax.experimental import pallas as pl
from jax.experimental.pallas import tpu as pltpu


# ----------------------------------------------------------------------------
# Tiled matmul kernel with fused epilogues (bias / bias+relu / bias+residual+LN)
# ----------------------------------------------------------------------------

def _pick_tile(dim, target, step):
    """Largest tile <= target dividing dim, preferring multiples of `step`."""
    if dim <= target:
        return dim
    t = (target // step) * step
    while t >= step:
        if dim % t == 0:
            return t
        t -= step
    for t in range(min(target, dim), 0, -1):
        if dim % t == 0:
            return t
    return dim


def _matmul_kernel(x_ref, w_ref, b_ref, *rest, epilogue, eps):
    if epilogue == "residual_ln":
        res_ref, g_ref, bn_ref, o_ref, acc_ref = rest
    else:
        o_ref, acc_ref = rest

    @pl.when(pl.program_id(2) == 0)
    def _init():
        acc_ref[...] = jnp.zeros_like(acc_ref)

    acc_ref[...] += jnp.dot(x_ref[...], w_ref[...],
                            preferred_element_type=jnp.float32)

    @pl.when(pl.program_id(2) == pl.num_programs(2) - 1)
    def _finalize():
        y = acc_ref[...] + b_ref[...]
        if epilogue == "relu":
            y = jnp.maximum(y, 0.0)
        elif epilogue == "residual_ln":
            mu = jnp.mean(y, axis=-1, keepdims=True)
            var = jnp.mean(jnp.square(y - mu), axis=-1, keepdims=True)
            yn = (y - mu) * jax.lax.rsqrt(var + eps)
            y = res_ref[...] + yn * g_ref[...] + bn_ref[...]
        o_ref[...] = y.astype(o_ref.dtype)


def fused_linear(x, w, b, *, epilogue=None, residual=None, gamma=None, beta=None,
                 eps=1e-5):
    """out = epilogue(x @ w + b); epilogue in {None, 'relu', 'residual_ln'}.

    'residual_ln' computes residual + LayerNorm(x @ w + b) with gamma/beta.
    """
    M, K = x.shape
    K2, N = w.shape
    assert K2 == K
    # Tile targets keep the double-buffered working set far below v7x's 64 MiB.
    tm = _pick_tile(M, 256, 8)
    tk = _pick_tile(K, 512, 128)
    # LayerNorm normalizes over the full feature dim -> do not tile N for it.
    tn = N if epilogue == "residual_ln" else _pick_tile(N, 256, 128)

    grid = (M // tm, N // tn, K // tk)

    in_specs = [
        pl.BlockSpec((tm, tk), lambda i, j, k: (i, k)),
        pl.BlockSpec((tk, tn), lambda i, j, k: (k, j)),
        pl.BlockSpec((1, tn), lambda i, j, k: (0, j)),
    ]
    args = [x, w, b.reshape(1, N)]
    if epilogue == "residual_ln":
        in_specs += [
            pl.BlockSpec((tm, tn), lambda i, j, k: (i, j)),
            pl.BlockSpec((1, tn), lambda i, j, k: (0, j)),
            pl.BlockSpec((1, tn), lambda i, j, k: (0, j)),
        ]
        args += [residual, gamma.reshape(1, N), beta.reshape(1, N)]

    return pl.pallas_call(
        functools.partial(_matmul_kernel, epilogue=epilogue, eps=eps),
        out_shape=jax.ShapeDtypeStruct((M, N), jnp.float32),
        grid=grid,
        in_specs=in_specs,
        out_specs=pl.BlockSpec((tm, tn), lambda i, j, k: (i, j)),
        scratch_shapes=[pltpu.VMEM((tm, tn), jnp.float32)],
        compiler_params=pltpu.CompilerParams(
            dimension_semantics=("parallel", "parallel", "arbitrary"),
            vmem_limit_bytes=64 * 1024 * 1024,
        ),
    )(*args)


# ----------------------------------------------------------------------------
# Head-batched attention kernel (one batch element per grid step)
# ----------------------------------------------------------------------------

def _attention_kernel(q_ref, k_ref, v_ref, m_ref, *out_refs, scale, need_weights):
    if need_weights:
        ctx_ref, attn_ref = out_refs
    else:
        (ctx_ref,) = out_refs

    q = q_ref[0]          # (H, Lq, dk)
    k = k_ref[0]          # (H, Lk, dk)
    v = v_ref[0]          # (H, Lk, dk)
    mask = m_ref[0, 0]    # (Lq or 1, Lk) — not broadcast over heads in HBM

    # scores: contract on dk with H as a batch dim (no K transpose / relayout).
    s = jax.lax.dot_general(q, k, (((2,), (2,)), ((0,), (0,))),
                            preferred_element_type=jnp.float32)
    s = s * scale
    s = jnp.where(mask[None, :, :] != 0.0, s, jnp.float32(-1e9))

    s_max = jnp.max(s, axis=-1, keepdims=True)
    p = jnp.exp(s - s_max)
    denom = jnp.sum(p, axis=-1, keepdims=True)
    p = p * pl.reciprocal(denom, approx=True)     # divide goes to the EUP slot

    ctx = jax.lax.dot_general(p, v, (((2,), (1,)), ((0,), (0,))),
                              preferred_element_type=jnp.float32)
    ctx_ref[0] = ctx
    if need_weights:
        attn_ref[0] = p


def scaled_dot_product_attention(q, k, v, mask, *, need_weights):
    """q,k,v: (B, H, L, dk); mask: (B, 1, Lq_or_1, Lk) (nonzero = keep)."""
    B, H, Lq, dk = q.shape
    Lk = k.shape[2]
    Lq_m = mask.shape[2]
    scale = 1.0 / math.sqrt(dk)

    in_specs = [
        pl.BlockSpec((1, H, Lq, dk), lambda b: (b, 0, 0, 0)),
        pl.BlockSpec((1, H, Lk, dk), lambda b: (b, 0, 0, 0)),
        pl.BlockSpec((1, H, Lk, dk), lambda b: (b, 0, 0, 0)),
        pl.BlockSpec((1, 1, Lq_m, Lk), lambda b: (b, 0, 0, 0)),
    ]
    ctx_shape = jax.ShapeDtypeStruct((B, H, Lq, dk), jnp.float32)
    ctx_spec = pl.BlockSpec((1, H, Lq, dk), lambda b: (b, 0, 0, 0))

    if need_weights:
        out_shape = (ctx_shape, jax.ShapeDtypeStruct((B, H, Lq, Lk), jnp.float32))
        out_specs = (ctx_spec, pl.BlockSpec((1, H, Lq, Lk), lambda b: (b, 0, 0, 0)))
    else:
        out_shape = ctx_shape
        out_specs = ctx_spec

    out = pl.pallas_call(
        functools.partial(_attention_kernel, scale=scale,
                          need_weights=need_weights),
        out_shape=out_shape,
        grid=(B,),
        in_specs=in_specs,
        out_specs=out_specs,
        compiler_params=pltpu.CompilerParams(
            dimension_semantics=("parallel",),
            vmem_limit_bytes=64 * 1024 * 1024,
        ),
    )(q, k, v, mask)

    if need_weights:
        return out
    return out, None


# ----------------------------------------------------------------------------
# Sub-layer wrappers (plain JAX glue around the kernels)
# ----------------------------------------------------------------------------

def mha_block(x_q, x_kv, mask, p, n_head, ln_gamma, ln_beta, *, need_weights):
    """Returns (x_q + LayerNorm(out_proj(MHA(x_q, x_kv, x_kv, mask))), attn)."""
    B, Lq, D = x_q.shape
    Lk = x_kv.shape[1]
    dk = D // n_head

    xq2 = x_q.reshape(B * Lq, D)

    if x_q is x_kv:
        # Self-attention: one fused QKV projection.
        wqkv = jnp.concatenate([p["wq"], p["wk"], p["wv"]], axis=1)
        bqkv = jnp.concatenate([p["bq"], p["bk"], p["bv"]], axis=0)
        qkv = fused_linear(xq2, wqkv, bqkv)                         # (B*Lq, 3D)
        qkv = qkv.reshape(B, Lq, 3, n_head, dk).transpose(2, 0, 3, 1, 4)
        q4, k4, v4 = qkv[0], qkv[1], qkv[2]                         # (B,H,L,dk)
    else:
        # Cross-attention: Q from x_q; fused K/V projection from x_kv.
        xkv2 = x_kv.reshape(B * Lk, D)
        q4 = fused_linear(xq2, p["wq"], p["bq"]).reshape(
            B, Lq, n_head, dk).transpose(0, 2, 1, 3)
        wkv = jnp.concatenate([p["wk"], p["wv"]], axis=1)
        bkv = jnp.concatenate([p["bk"], p["bv"]], axis=0)
        kv = fused_linear(xkv2, wkv, bkv)                           # (B*Lk, 2D)
        kv = kv.reshape(B, Lk, 2, n_head, dk).transpose(2, 0, 3, 1, 4)
        k4, v4 = kv[0], kv[1]

    ctx, attn = scaled_dot_product_attention(
        q4, k4, v4, mask.astype(jnp.float32), need_weights=need_weights)

    # merge heads: (B, H, Lq, dk) -> (B*Lq, D)
    ctx2 = ctx.transpose(0, 2, 1, 3).reshape(B * Lq, D)

    # output projection with fused residual + LayerNorm epilogue:
    #   out = x_q + LayerNorm(ctx @ wo + bo)         (dropout = identity, eval)
    out = fused_linear(ctx2, p["wo"], p["bo"],
                       epilogue="residual_ln", residual=xq2,
                       gamma=ln_gamma, beta=ln_beta)
    return out.reshape(B, Lq, D), attn


def ffn_block(x, p, ln_gamma, ln_beta):
    """Returns x + LayerNorm(W2 @ relu(W1 @ x + b1) + b2)."""
    B, L, D = x.shape
    x2 = x.reshape(B * L, D)
    h = fused_linear(x2, p["w1"], p["b1"], epilogue="relu")
    # TODO(synk): dropout inside FeedForward / after sub-layers is identity (eval mode).
    out = fused_linear(h, p["w2"], p["b2"],
                       epilogue="residual_ln", residual=x2,
                       gamma=ln_gamma, beta=ln_beta)
    return out.reshape(B, L, D)


def decoder_layer(trg, enc_src, trg_mask, src_mask, params, n_head):
    # 1) self attention — attention probabilities unused, so never computed/stored.
    trg, _ = mha_block(trg, trg, trg_mask, params["self_attn"], n_head,
                       params["ln1_g"], params["ln1_b"], need_weights=False)
    # 2) encoder-decoder attention (returns attention probabilities).
    trg, attention = mha_block(trg, enc_src, src_mask, params["enc_dec_attn"],
                               n_head, params["ln2_g"], params["ln2_b"],
                               need_weights=True)
    # 3) position-wise feed forward.
    trg = ffn_block(trg, params["ffn"], params["ln3_g"], params["ln3_b"])
    return trg, attention


# ----------------------------------------------------------------------------
# Deterministic parameter init
# ----------------------------------------------------------------------------

def init_params(key, d_model, ffn_hidden):
    keys = jax.random.split(key, 12)

    def w(k, shape):
        return 0.02 * jax.random.normal(k, shape, jnp.float32)

    def attn_params(ks):
        return {
            "wq": w(ks[0], (d_model, d_model)), "bq": jnp.zeros((d_model,), jnp.float32),
            "wk": w(ks[1], (d_model, d_model)), "bk": jnp.zeros((d_model,), jnp.float32),
            "wv": w(ks[2], (d_model, d_model)), "bv": jnp.zeros((d_model,), jnp.float32),
            "wo": w(ks[3], (d_model, d_model)), "bo": jnp.zeros((d_model,), jnp.float32),
        }

    return {
        "self_attn": attn_params(keys[0:4]),
        "enc_dec_attn": attn_params(keys[4:8]),
        "ffn": {
            "w1": w(keys[8], (d_model, ffn_hidden)), "b1": jnp.zeros((ffn_hidden,), jnp.float32),
            "w2": w(keys[9], (ffn_hidden, d_model)), "b2": jnp.zeros((d_model,), jnp.float32),
        },
        "ln1_g": jnp.ones((d_model,), jnp.float32), "ln1_b": jnp.zeros((d_model,), jnp.float32),
        "ln2_g": jnp.ones((d_model,), jnp.float32), "ln2_b": jnp.zeros((d_model,), jnp.float32),
        "ln3_g": jnp.ones((d_model,), jnp.float32), "ln3_b": jnp.zeros((d_model,), jnp.float32),
    }


# ----------------------------------------------------------------------------
# Driver
# ----------------------------------------------------------------------------

if __name__ == "__main__":
    B, L_trg, L_src = 2, 8, 8
    d_model, n_head, ffn_hidden = 32, 4, 64

    root = jax.random.PRNGKey(0)
    k_trg, k_src, k_par = jax.random.split(root, 3)

    trg = jax.random.normal(k_trg, (B, L_trg, d_model), jnp.float32)
    enc_src = jax.random.normal(k_src, (B, L_src, d_model), jnp.float32)

    # causal target mask (B, 1, Lt, Lt); full source mask (B, 1, 1, Ls)
    trg_mask = jnp.broadcast_to(
        jnp.tril(jnp.ones((L_trg, L_trg), jnp.float32))[None, None],
        (B, 1, L_trg, L_trg))
    src_mask = jnp.ones((B, 1, 1, L_src), jnp.float32)

    params = init_params(k_par, d_model, ffn_hidden)

    out, attention = decoder_layer(trg, enc_src, trg_mask, src_mask, params, n_head)
    jax.block_until_ready((out, attention))

    assert out.shape == (B, L_trg, d_model)
    assert attention.shape == (B, n_head, L_trg, L_src)
    print("KERNEL_OK")
</pallas_src>

<mosaic_0001>
module attributes {stable_mosaic.version = 11 : i64} {
  func.func @_matmul_kernel(%arg0: i32, %arg1: i32, %arg2: i32, %arg3: memref<16x32xf32, #tpu.memory_space<vmem>>, %arg4: memref<32x96xf32, #tpu.memory_space<vmem>>, %arg5: memref<1x96xf32, #tpu.memory_space<vmem>>, %arg6: memref<16x96xf32, #tpu.memory_space<vmem>>, %arg7: memref<16x96xf32, #tpu.memory_space<vmem>>) attributes {dimension_semantics = [#tpu.dimension_semantics<parallel>, #tpu.dimension_semantics<parallel>, #tpu.dimension_semantics<arbitrary>], iteration_bounds = array<i64: 1, 1, 1>, scalar_prefetch = 0 : i64, scratch_operands = 1 : i64, tpu.core_type = #tpu.core_type<tc>, window_params = [{transform_indices = @transform_0, window_bounds = array<i64: 16, 32>}, {transform_indices = @transform_1, window_bounds = array<i64: 32, 96>}, {transform_indices = @transform_2, window_bounds = array<i64: 1, 96>}, {transform_indices = @transform_3, window_bounds = array<i64: 16, 96>}]} {
    %c0_i32 = arith.constant 0 : i32
    %0 = arith.cmpi eq, %arg2, %c0_i32 : i32
    %1 = arith.extui %0 : i1 to i32
    %c0_i32_0 = arith.constant 0 : i32
    %2 = arith.cmpi ne, %1, %c0_i32_0 : i32
    scf.if %2 {
      %cst_10 = arith.constant 0.000000e+00 : f32
      %12 = vector.broadcast %cst_10 : f32 to vector<16x96xf32>
      %c0_11 = arith.constant 0 : index
      %c0_12 = arith.constant 0 : index
      %13 = vector.load %arg7[%c0_11, %c0_12] : memref<16x96xf32, #tpu.memory_space<vmem>>, vector<16x96xf32>
      tpu.vector_store %arg7[%c0_11, %c0_12], %12 {strides = array<i32>} : memref<16x96xf32, #tpu.memory_space<vmem>>, vector<16x96xf32>,
    } else {
    }
    %c0 = arith.constant 0 : index
    %c0_1 = arith.constant 0 : index
    %3 = vector.load %arg7[%c0, %c0_1] : memref<16x96xf32, #tpu.memory_space<vmem>>, vector<16x96xf32>
    %c0_2 = arith.constant 0 : index
    %c0_3 = arith.constant 0 : index
    %4 = vector.load %arg3[%c0_2, %c0_3] : memref<16x32xf32, #tpu.memory_space<vmem>>, vector<16x32xf32>
    %c0_4 = arith.constant 0 : index
    %c0_5 = arith.constant 0 : index
    %5 = vector.load %arg4[%c0_4, %c0_5] : memref<32x96xf32, #tpu.memory_space<vmem>>, vector<32x96xf32>
    %cst = arith.constant dense<0.000000e+00> : vector<16x96xf32>
    %6 = tpu.matmul %4, %5, %cst {dimension_numbers = #tpu.dot_dimension_numbers<[1], [0], [0], [1], [0, 0, 1, 1], [], []>} : vector<16x32xf32>, vector<32x96xf32>, vector<16x96xf32> -> vector<16x96xf32>
    %7 = arith.addf %3, %6 : vector<16x96xf32>
    %c0_6 = arith.constant 0 : index
    %c0_7 = arith.constant 0 : index
    %8 = vector.load %arg7[%c0_6, %c0_7] : memref<16x96xf32, #tpu.memory_space<vmem>>, vector<16x96xf32>
    tpu.vector_store %arg7[%c0_6, %c0_7], %7 {strides = array<i32>} : memref<16x96xf32, #tpu.memory_space<vmem>>, vector<16x96xf32>,
    %c0_i32_8 = arith.constant 0 : i32
    %9 = arith.cmpi eq, %arg2, %c0_i32_8 : i32
    %10 = arith.extui %9 : i1 to i32
    %c0_i32_9 = arith.constant 0 : i32
    %11 = arith.cmpi ne, %10, %c0_i32_9 : i32
    scf.if %11 {
      %c0_10 = arith.constant 0 : index
      %c0_11 = arith.constant 0 : index
      %12 = vector.load %arg7[%c0_10, %c0_11] : memref<16x96xf32, #tpu.memory_space<vmem>>, vector<16x96xf32>
      %c0_12 = arith.constant 0 : index
      %c0_13 = arith.constant 0 : index
      %13 = vector.load %arg5[%c0_12, %c0_13] : memref<1x96xf32, #tpu.memory_space<vmem>>, vector<1x96xf32>
      %14 = vector.broadcast %13 : vector<1x96xf32> to vector<16x96xf32>
      %15 = arith.addf %12, %14 : vector<16x96xf32>
      %c0_14 = arith.constant 0 : index
      %c0_15 = arith.constant 0 : index
      %16 = vector.load %arg6[%c0_14, %c0_15] : memref<16x96xf32, #tpu.memory_space<vmem>>, vector<16x96xf32>
      tpu.vector_store %arg6[%c0_14, %c0_15], %15 {strides = array<i32>} : memref<16x96xf32, #tpu.memory_space<vmem>>, vector<16x96xf32>,
    } else {
    }
    return
  }
  func.func @transform_0(%arg0: i32, %arg1: i32, %arg2: i32) -> (i32, i32) {
    %c0_i32 = arith.constant 0 : i32
    return %arg0, %arg2 : i32, i32
  }
  func.func @transform_1(%arg0: i32, %arg1: i32, %arg2: i32) -> (i32, i32) {
    %c0_i32 = arith.constant 0 : i32
    return %arg2, %arg1 : i32, i32
  }
  func.func @transform_2(%arg0: i32, %arg1: i32, %arg2: i32) -> (i32, i32) {
    %c0_i32 = arith.constant 0 : i32
    %c0_i32_0 = arith.constant 0 : i32
    return %c0_i32, %arg1 : i32, i32
  }
  func.func @transform_3(%arg0: i32, %arg1: i32, %arg2: i32) -> (i32, i32) {
    %c0_i32 = arith.constant 0 : i32
    return %arg0, %arg1 : i32, i32
  }
}

</mosaic_0001>

<llo_original>
// kernel: tpu_custom_call.1
$region0: #{tpu_custom_call.1}
  #allocation0 [shape = 'u32[]', space=smem, size = 0x4, offset = 0x4, fixed_abs, tag = 'smem constant byte address 0x4 - core index']
  #allocation1 [shape = 'u32[144,128]{1,0:T(1,128)}', space=vmem, size = 0x12000, scoped, tag = 'internal scratch']
  #allocation2 [shape = 'f32[16,96]{1,0:T(8,128)}', space=vmem, size = 0x2000, scoped, tag = 'scratch operand']
  %s0 = inlined_call_operand.hbm [shape: f32[16,32], index: 0, kind: input, shape index: {}]
  %s1 = inlined_call_operand.hbm [shape: f32[32,96], index: 1, kind: input, shape index: {}]
  %s2 = inlined_call_operand.vmem [shape: f32[1,96], index: 2, kind: input, shape index: {}]
  %s3 = inlined_call_operand.hbm [shape: f32[16,96], index: 3, kind: output, shape index: {}]
  %s4 = sld [smem:[#allocation0]]
  $region38: #{tpu_custom_call.1} parent=0
    _
  %s6 = ssub.s32 1, %s4
  %s7 = scalar_select 0, %s6, %s4
  $region1: #{tpu_custom_call.1} parent=0
    #allocation3 [shape = 'u8[8192]{0}', space=vmem, size = 0x2000, scoped, tag = 'input window, operand 0, single buffered']
    #allocation4 [shape = 's32[1]{0}', space=sflag, size = 0x4, scoped, tag = 'scoped memory for tpu_custom_call.1']
    #allocation5 [shape = 's32[1]{0}', space=sflag, size = 0x4, scoped, tag = 'scoped memory for tpu_custom_call.1']
    #allocation6 [shape = 'u8[16384]{0}', space=vmem, size = 0x4000, scoped, tag = 'input window, operand 1, single buffered']
    #allocation7 [shape = 's32[1]{0}', space=sflag, size = 0x4, scoped, tag = 'scoped memory for tpu_custom_call.1']
    #allocation8 [shape = 'u8[8192]{0}', space=vmem, size = 0x2000, scoped, tag = 'output window, operand 0, single buffered']
    %8 = vsyncpa [#allocation4], 0
    %9 = vsyncpa [#allocation7], 0
    %10 = vsyncpa [#allocation5], 0
    // Predicated region
    $region2: #{tpu_custom_call.1} parent=1 // pred_check
      _
    $region3: #{tpu_custom_call.1} parent=1 // pred_check_branch
      %12 = sbr.rel (0) target = $region5
    $region4: #{tpu_custom_call.1} parent=1 // pred_region
      %s14 = ssub.s32 256, 256
      %15 = vsyncadd [#allocation4], %s14
      %s16 = sshll.u32 [#allocation3], 4
      %s17 = int_to_ptr.vmem [resolvable:$true] %s16
      %22 = dma.hbm_to_vmem [thread:$0]  %s0, 256, %s17, [#allocation4], 128, 128, 8
    $region5: #{tpu_custom_call.1} parent=1 // pred_fallthru
      _
    // Predicated region
    $region6: #{tpu_custom_call.1} parent=1 // pred_check
      _
    $region7: #{tpu_custom_call.1} parent=1 // pred_check_branch
      %24 = sbr.rel (0) target = $region9
    $region8: #{tpu_custom_call.1} parent=1 // pred_region
      %s26 = ssub.s32 512, 512
      %27 = vsyncadd [#allocation7], %s26
      %s28 = sshll.u32 [#allocation6], 4
      %s29 = int_to_ptr.vmem [resolvable:$true] %s28
      %34 = dma.hbm_to_vmem [thread:$0]  %s1, 512, %s29, [#allocation7], 128, 128, 8
    $region9: #{tpu_custom_call.1} parent=1 // pred_fallthru
      _
    // Predicated region
    $region10: #{tpu_custom_call.1} parent=1 // pred_check
      _
    $region11: #{tpu_custom_call.1} parent=1 // pred_check_branch
      %36 = sbr.rel (0) target = $region13
    $region12: #{tpu_custom_call.1} parent=1 // pred_region
      _
    $region13: #{tpu_custom_call.1} parent=1 // pred_fallthru
      _
    // Predicated region
    $region14: #{tpu_custom_call.1} parent=1 // pred_check
      _
    $region15: #{tpu_custom_call.1} parent=1 // pred_check_branch
      %38 = sbr.rel (0) target = $region17
    $region16: #{tpu_custom_call.1} parent=1 // pred_region
      %39 = dma.done [#allocation4], 256
    $region17: #{tpu_custom_call.1} parent=1 // pred_fallthru
      _
    // Predicated region
    $region18: #{tpu_custom_call.1} parent=1 // pred_check
      _
    $region19: #{tpu_custom_call.1} parent=1 // pred_check_branch
      %41 = sbr.rel (0) target = $region21
    $region20: #{tpu_custom_call.1} parent=1 // pred_region
      %42 = dma.done [#allocation7], 512
    $region21: #{tpu_custom_call.1} parent=1 // pred_fallthru
      _
    %p43 = scmp.eq.s32.totalorder 0, 0
    // Predicated region
    $region22: #{tpu_custom_call.1} parent=1 // pred_check
      %p44 = pneg %p43
    $region23: #{tpu_custom_call.1} parent=1 // pred_check_branch
      %46 = sbr.rel (%p44) target = $region25
    $region24: #{tpu_custom_call.1} parent=1 // pred_region
      %vm47 = vcmask 785408
      %48 = vst.msk [vmem:[#allocation2] sm:$0xff] %vm47, 0.0
      %49 = vst.msk [vmem:[#allocation2 + $0x8] sm:$0xff] %vm47, 0.0
    $region25: #{tpu_custom_call.1} parent=1 // pred_fallthru
      _
    %v50 = vld [vmem:[#allocation2] sm:$0xff]
    %v51 = vld [vmem:[#allocation2 + $0x8] sm:$0xff]
    %v52 = vld [vmem:[#allocation3] sm:$0xff]
    %v53 = vld [vmem:[#allocation3 + $0x8] sm:$0xff]
    %v54 = vld [vmem:[#allocation6] sm:$0xff]
    %v55 = vld [vmem:[#allocation6 + $0x8] sm:$0xff]
    %v56 = vld [vmem:[#allocation6 + $0x10] sm:$0xff]
    %v57 = vld [vmem:[#allocation6 + $0x18] sm:$0xff]
    %vm58 = vcmask 261120
    %v60 = vsel %vm58, %v52, 0
    %v63 = vsel %vm58, %v53, 0
    %65 = vmatprep.subr.mxu0 0.0
    %66 = vmatpush1.msra.mxu0 0.0
    %67 = vmatprep.subr.mxu0 0.0
    %68 = vmatpush1.msra.mxu0 0.0
    %69 = vmatprep.subr.mxu0 0.0
    %70 = vmatpush1.msra.mxu0 0.0
    %71 = vmatprep.subr.mxu0 0.0
    %72 = vmatpush1.msra.mxu0 0.0
    %73 = vmatprep.subr.mxu0 0.0
    %74 = vmatpush1.msra.mxu0 0.0
    %75 = vmatprep.subr.mxu0 0.0
    %76 = vmatpush1.msra.mxu0 0.0
    %77 = vmatprep.subr.mxu0 0.0
    %78 = vmatpush1.msra.mxu0 0.0
    %79 = vmatprep.subr.mxu0 0.0
    %80 = vmatpush1.msra.mxu0 0.0
    %81 = vmatprep.subr.mxu0 0.0
    %82 = vmatpush1.msra.mxu0 0.0
    %83 = vmatprep.subr.mxu0 0.0
    %84 = vmatpush1.msra.mxu0 0.0
    %85 = vmatprep.subr.mxu0 0.0
    %86 = vmatpush1.msra.mxu0 0.0
    %87 = vmatprep.subr.mxu0 0.0
    %88 = vmatpush1.msra.mxu0 0.0
    %89 = vmatprep.subr.mxu0 0.0
    %90 = vmatpush1.msra.mxu0 %v57
    %91 = vmatprep.subr.mxu0 0.0
    %92 = vmatpush1.msra.mxu0 %v56
    %93 = vmatprep.subr.mxu0 0.0
    %94 = vmatpush1.msra.mxu0 %v55
    %95 = vmatprep.subr.mxu0 0.0
    %96 = vmatpush1.msra.mxu0 %v54
    %97 = vmatprep.subr.mxu0 0.0
    %98 = vmatpush2.msra.mxu0 0.0
    %99 = vmatprep.subr.mxu0 0.0
    %100 = vmatpush2.msra.mxu0 0.0
    %101 = vmatprep.subr.mxu0 0.0
    %102 = vmatpush2.msra.mxu0 0.0
    %103 = vmatprep.subr.mxu0 0.0
    %104 = vmatpush2.msra.mxu0 0.0
    %105 = vmatprep.subr.mxu0 0.0
    %106 = vmatpush2.msra.mxu0 0.0
    %107 = vmatprep.subr.mxu0 0.0
    %108 = vmatpush2.msra.mxu0 0.0
    %109 = vmatprep.subr.mxu0 0.0
    %110 = vmatpush2.msra.mxu0 0.0
    %111 = vmatprep.subr.mxu0 0.0
    %112 = vmatpush2.msra.mxu0 0.0
    %113 = vmatprep.subr.mxu0 0.0
    %114 = vmatpush2.msra.mxu0 0.0
    %115 = vmatprep.subr.mxu0 0.0
    %116 = vmatpush2.msra.mxu0 0.0
    %117 = vmatprep.subr.mxu0 0.0
    %118 = vmatpush2.msra.mxu0 0.0
    %119 = vmatprep.subr.mxu0 0.0
    %120 = vmatpush2.msra.mxu0 0.0
    %121 = vmatprep.subr.mxu0 0.0
    %122 = vmatpush2.msra.mxu0 0.0
    %123 = vmatprep.subr.mxu0 0.0
    %124 = vmatpush2.msra.mxu0 0.0
    %125 = vmatprep.subr.mxu0 0.0
    %126 = vmatpush2.msra.mxu0 0.0
    %127 = vmatprep.subr.mxu0 0.0
    %128 = vmatpush2.msra.mxu0 0.0
    %129 = vmatprep.mubr.f32.mxu0 0.0
    %130 = vmatmul.mubr.f32.gmra.mxu0 %v60
    %v131 = vpop.f32.mrf.mxu0
    %v132 = vadd.f32 0.0, %v131
    %v133 = vpop.f32.mrf.mxu0
    %134 = vmatprep.mubr.f32.mxu0 0.0
    %135 = vmatmul.mubr.f32.gmra.mxu0 %v63
    %v136 = vpop.f32.mrf.mxu0
    %v137 = vadd.f32 0.0, %v136
    %v138 = vpop.f32.mrf.mxu0
    %139 = vdwg.mxu0
    %v140 = vadd.f32 %v50, %v132
    %v141 = vadd.f32 %v51, %v137
    %vm142 = vcmask 785408
    %143 = vst.msk [vmem:[#allocation2] sm:$0xff] %vm142, %v140
    %144 = vst.msk [vmem:[#allocation2 + $0x8] sm:$0xff] %vm142, %v141
    // Predicated region
    $region26: #{tpu_custom_call.1} parent=1 // pred_check
      %p145 = pneg %p43
    $region27: #{tpu_custom_call.1} parent=1 // pred_check_branch
      %147 = sbr.rel (%p145) target = $region29
    $region28: #{tpu_custom_call.1} parent=1 // pred_region
      %v148 = vld [vmem:[#allocation2] sm:$0xff]
      %v149 = vld [vmem:[#allocation2 + $0x8] sm:$0xff]
      %v150 = vld [vmem:[%s2] sm:$0x1]
      %v152 = vlaneseq
      %v153 = vshrl.u32 %v152, 7
      %v154 = vsub.s32 0, %v153
      %v155 = vrot.slane %v150, %v154
      %v157 = vadd.f32 %v148, %v155
      %v158 = vadd.f32 %v149, %v155
      %159 = vst.msk [vmem:[#allocation8] sm:$0xff] %vm142, %v157
      %160 = vst.msk [vmem:[#allocation8 + $0x8] sm:$0xff] %vm142, %v158
    $region29: #{tpu_custom_call.1} parent=1 // pred_fallthru
      _
    // Predicated region
    $region30: #{tpu_custom_call.1} parent=1 // pred_check
      _
    $region31: #{tpu_custom_call.1} parent=1 // pred_check_branch
      %162 = sbr.rel (0) target = $region33
    $region32: #{tpu_custom_call.1} parent=1 // pred_region
      %s164 = ssub.s32 256, 256
      %165 = vsyncadd [#allocation5], %s164
      %s166 = sshll.u32 [#allocation8], 4
      %s167 = int_to_ptr.vmem [resolvable:$true] %s166
      %172 = dma.vmem_to_hbm [thread:$0]  %s167, 256, %s3, [#allocation5], 128, 128, 8
    $region33: #{tpu_custom_call.1} parent=1 // pred_fallthru
      _
    // Predicated region
    $region34: #{tpu_custom_call.1} parent=1 // pred_check
      _
    $region35: #{tpu_custom_call.1} parent=1 // pred_check_branch
      %174 = sbr.rel (0) target = $region37
    $region36: #{tpu_custom_call.1} parent=1 // pred_region
      %175 = dma.done [#allocation5], 256
    $region37: #{tpu_custom_call.1} parent=1 // pred_fallthru
      _
    %176 = vsyncpa [#allocation4], 1
    %177 = vsyncpa [#allocation7], 1
    %178 = vsyncpa [#allocation5], 1

</llo_original>
